<compile_context>
chip_gen: v7x
topology: tpu7x:2x2x1
jax: 0.10.0
libtpu: 0.0.40
codegen_flags: <defaults>
</compile_context>

<pallas_src>
import jax
import jax.numpy as jnp
from jax import lax
from jax.experimental import pallas as pl
from jax.experimental.pallas import tpu as pltpu


def _mlp_kernel(x_ref, w1_ref, w3_ref, w2_ref, o_ref, acc_ref):
    """One (token-tile i, inter-tile k) step of the gated MLP.

    x_ref  : (tm, dim)       token tile
    w1_ref : (tn, dim)       gate-proj weight tile (nn.Linear layout, NOT transposed)
    w3_ref : (tn, dim)       up-proj   weight tile
    w2_ref : (dim, tn)       down-proj weight tile
    o_ref  : (tm, dim)       output tile (written only on the last k)
    acc_ref: (tm, dim) f32   accumulator across the inter_dim (k) axis
    """
    k = pl.program_id(1)

    @pl.when(k == 0)
    def _init():
        acc_ref[...] = jnp.zeros_like(acc_ref)

    x = x_ref[...]
    # x @ W1^T and x @ W3^T without materializing transposed weights:
    # contract the last axes of (tm, dim) x (tn, dim) -> (tm, tn).
    dn = (((1,), (1,)), ((), ()))
    h1 = lax.dot_general(x, w1_ref[...], dn, preferred_element_type=jnp.float32)
    h3 = lax.dot_general(x, w3_ref[...], dn, preferred_element_type=jnp.float32)

    # SiLU(h1) * h3 in f32 on the VPU/EUP.
    gated = (h1 * jax.nn.sigmoid(h1)) * h3

    # Partial down-projection for this inter tile:
    # (tm, tn) x (dim, tn) contract tn -> (tm, dim), f32 accumulation.
    # NOTE: `gated` is cast down to the MXU input dtype (bf16 in production) —
    # standard, deliberate precision drop before the second matmul.
    acc_ref[...] += lax.dot_general(
        gated.astype(w2_ref.dtype), w2_ref[...], dn,
        preferred_element_type=jnp.float32)

    @pl.when(k == pl.num_programs(1) - 1)
    def _finalize():
        o_ref[...] = acc_ref[...].astype(o_ref.dtype)


def _round_up(x, m):
    return (x + m - 1) // m * m


def _choose_inter_tile(inter_dim, desired):
    """Largest multiple of 128 that divides inter_dim and is <= desired."""
    if inter_dim <= desired:
        return inter_dim
    cand = (desired // 128) * 128
    while cand >= 128:
        if inter_dim % cand == 0:
            return cand
        cand -= 128
    return inter_dim  # no 128-aligned divisor: keep the whole inter dim in one tile


def mlp_pallas(x, w1, w2, w3, *, tm=256, tn=512, compute_dtype=None):
    """Gated MLP forward.

    x : (..., dim)
    w1: (inter_dim, dim)   gate projection  (nn.Linear layout: [out, in])
    w2: (dim, inter_dim)   down projection
    w3: (inter_dim, dim)   up projection
    compute_dtype: optional dtype for the MXU inputs (e.g. jnp.bfloat16);
                   output keeps x's original dtype, accumulation stays f32.
    """
    orig_shape = x.shape
    dim = orig_shape[-1]
    inter_dim = w1.shape[0]
    assert w3.shape == (inter_dim, dim)
    assert w2.shape == (dim, inter_dim)

    out_dtype = x.dtype
    if compute_dtype is not None:
        x = x.astype(compute_dtype)
        w1 = w1.astype(compute_dtype)
        w2 = w2.astype(compute_dtype)
        w3 = w3.astype(compute_dtype)

    x2d = x.reshape(-1, dim)
    m = x2d.shape[0]

    # Token tile: don't over-pad tiny inputs, cap at `tm` for large ones.
    tm_eff = min(tm, _round_up(m, 8))
    m_pad = _round_up(m, tm_eff)
    if m_pad != m:
        x2d = jnp.pad(x2d, ((0, m_pad - m), (0, 0)))

    tn_eff = _choose_inter_tile(inter_dim, tn)
    n_k = inter_dim // tn_eff

    itemsize = jnp.dtype(x2d.dtype).itemsize
    # Double-buffered input/output tiles + f32 accumulator.
    tile_bytes = (
        2 * (tm_eff * dim * itemsize)           # x
        + 2 * 2 * (tn_eff * dim * itemsize)     # w1 + w3
        + 2 * (dim * tn_eff * itemsize)         # w2
        + 2 * (tm_eff * dim * itemsize)         # out
        + tm_eff * dim * 4                      # accumulator
    )
    vmem_limit = int(min(max(tile_bytes * 3 // 2 + (2 << 20), 16 << 20), 100 << 20))

    cost = pl.CostEstimate(
        flops=6 * m_pad * dim * inter_dim,                 # three matmuls
        transcendentals=m_pad * inter_dim,                 # sigmoid
        bytes_accessed=(x2d.size + w1.size + w3.size + w2.size) * itemsize
        + m_pad * dim * jnp.dtype(out_dtype).itemsize,
    )

    out = pl.pallas_call(
        _mlp_kernel,
        out_shape=jax.ShapeDtypeStruct((m_pad, dim), out_dtype),
        grid_spec=pltpu.PrefetchScalarGridSpec(
            num_scalar_prefetch=0,
            grid=(m_pad // tm_eff, n_k),        # reduction (inter) axis last
            in_specs=[
                pl.BlockSpec((tm_eff, dim), lambda i, k: (i, 0)),
                pl.BlockSpec((tn_eff, dim), lambda i, k: (k, 0)),
                pl.BlockSpec((tn_eff, dim), lambda i, k: (k, 0)),
                pl.BlockSpec((dim, tn_eff), lambda i, k: (0, k)),
            ],
            out_specs=pl.BlockSpec((tm_eff, dim), lambda i, k: (i, 0)),
            scratch_shapes=[pltpu.VMEM((tm_eff, dim), jnp.float32)],
        ),
        compiler_params=pltpu.CompilerParams(
            dimension_semantics=("parallel", "arbitrary"),
            vmem_limit_bytes=vmem_limit,
        ),
        cost_estimate=cost,
    )(x2d, w1, w3, w2)

    return out[:m].reshape(orig_shape)


def mlp_reference(x, w1, w2, w3):
    h1 = x @ w1.T
    h3 = x @ w3.T
    gated = jax.nn.silu(h1) * h3
    return gated @ w2.T


if __name__ == "__main__":
    # Small shapes consistent with the module: batch=2, seq=8, dim=32, inter=64
    batch, seq, dim, inter_dim = 2, 8, 32, 64

    key = jax.random.PRNGKey(0)
    kx, k1, k2, k3 = jax.random.split(key, 4)

    x = jax.random.normal(kx, (batch, seq, dim), dtype=jnp.float32)
    # nn.Linear-style weights: (out_features, in_features), no bias.
    w1 = jax.random.normal(k1, (inter_dim, dim), dtype=jnp.float32) * 0.05
    w3 = jax.random.normal(k3, (inter_dim, dim), dtype=jnp.float32) * 0.05
    w2 = jax.random.normal(k2, (dim, inter_dim), dtype=jnp.float32) * 0.05

    ref = mlp_reference(x, w1, w2, w3)

    # f32 path (tight tolerance).
    out = jax.block_until_ready(mlp_pallas(x, w1, w2, w3))
    assert out.shape == (batch, seq, dim)
    assert jnp.allclose(out, ref, atol=1e-4, rtol=1e-4), "f32 mismatch vs reference"

    # bf16 MXU path (production dtype; f32 accumulation, looser tolerance).
    out_bf16 = jax.block_until_ready(
        mlp_pallas(x, w1, w2, w3, compute_dtype=jnp.bfloat16))
    assert out_bf16.shape == (batch, seq, dim)
    assert jnp.allclose(out_bf16, ref, atol=5e-2, rtol=5e-2), "bf16 mismatch vs reference"

    print("KERNEL_OK")
</pallas_src>

<mosaic_0001>
module attributes {stable_mosaic.version = 11 : i64} {
  func.func @_mlp_kernel(%arg0: i32, %arg1: i32, %arg2: memref<16x32xf32, #tpu.memory_space<vmem>>, %arg3: memref<64x32xf32, #tpu.memory_space<vmem>>, %arg4: memref<64x32xf32, #tpu.memory_space<vmem>>, %arg5: memref<32x64xf32, #tpu.memory_space<vmem>>, %arg6: memref<16x32xf32, #tpu.memory_space<vmem>>, %arg7: memref<16x32xf32, #tpu.memory_space<vmem>>) attributes {dimension_semantics = [#tpu.dimension_semantics<parallel>, #tpu.dimension_semantics<arbitrary>], iteration_bounds = array<i64: 1, 1>, scalar_prefetch = 0 : i64, scratch_operands = 1 : i64, tpu.core_type = #tpu.core_type<tc>, window_params = [{transform_indices = @transform_0, window_bounds = array<i64: 16, 32>}, {transform_indices = @transform_1, window_bounds = array<i64: 64, 32>}, {transform_indices = @transform_2, window_bounds = array<i64: 64, 32>}, {transform_indices = @transform_3, window_bounds = array<i64: 32, 64>}, {transform_indices = @transform_4, window_bounds = array<i64: 16, 32>}]} {
    %c0_i32 = arith.constant 0 : i32
    %0 = arith.cmpi eq, %arg1, %c0_i32 : i32
    %1 = arith.extui %0 : i1 to i32
    %c0_i32_0 = arith.constant 0 : i32
    %2 = arith.cmpi ne, %1, %c0_i32_0 : i32
    scf.if %2 {
      %cst_17 = arith.constant 0.000000e+00 : f32
      %23 = vector.broadcast %cst_17 : f32 to vector<16x32xf32>
      %c0_18 = arith.constant 0 : index
      %c0_19 = arith.constant 0 : index
      %24 = vector.load %arg7[%c0_18, %c0_19] : memref<16x32xf32, #tpu.memory_space<vmem>>, vector<16x32xf32>
      tpu.vector_store %arg7[%c0_18, %c0_19], %23 {strides = array<i32>} : memref<16x32xf32, #tpu.memory_space<vmem>>, vector<16x32xf32>,
    } else {
    }
    %c0 = arith.constant 0 : index
    %c0_1 = arith.constant 0 : index
    %3 = vector.load %arg2[%c0, %c0_1] : memref<16x32xf32, #tpu.memory_space<vmem>>, vector<16x32xf32>
    %c0_2 = arith.constant 0 : index
    %c0_3 = arith.constant 0 : index
    %4 = vector.load %arg3[%c0_2, %c0_3] : memref<64x32xf32, #tpu.memory_space<vmem>>, vector<64x32xf32>
    %cst = arith.constant dense<0.000000e+00> : vector<16x64xf32>
    %5 = tpu.matmul %3, %4, %cst {dimension_numbers = #tpu.dot_dimension_numbers<[1], [1], [0], [0], [0, 0, 1, 0], [], []>} : vector<16x32xf32>, vector<64x32xf32>, vector<16x64xf32> -> vector<16x64xf32>
    %c0_4 = arith.constant 0 : index
    %c0_5 = arith.constant 0 : index
    %6 = vector.load %arg4[%c0_4, %c0_5] : memref<64x32xf32, #tpu.memory_space<vmem>>, vector<64x32xf32>
    %cst_6 = arith.constant dense<0.000000e+00> : vector<16x64xf32>
    %7 = tpu.matmul %3, %6, %cst_6 {dimension_numbers = #tpu.dot_dimension_numbers<[1], [1], [0], [0], [0, 0, 1, 0], [], []>} : vector<16x32xf32>, vector<64x32xf32>, vector<16x64xf32> -> vector<16x64xf32>
    %8 = arith.negf %5 : vector<16x64xf32>
    %9 = math.exp %8 : vector<16x64xf32>
    %cst_7 = arith.constant 1.000000e+00 : f32
    %10 = vector.broadcast %cst_7 : f32 to vector<16x64xf32>
    %11 = arith.addf %10, %9 : vector<16x64xf32>
    %12 = arith.divf %10, %11 : vector<16x64xf32>
    %13 = arith.mulf %5, %12 : vector<16x64xf32>
    %14 = arith.mulf %13, %7 : vector<16x64xf32>
    %c0_8 = arith.constant 0 : index
    %c0_9 = arith.constant 0 : index
    %15 = vector.load %arg7[%c0_8, %c0_9] : memref<16x32xf32, #tpu.memory_space<vmem>>, vector<16x32xf32>
    %c0_10 = arith.constant 0 : index
    %c0_11 = arith.constant 0 : index
    %16 = vector.load %arg5[%c0_10, %c0_11] : memref<32x64xf32, #tpu.memory_space<vmem>>, vector<32x64xf32>
    %cst_12 = arith.constant dense<0.000000e+00> : vector<16x32xf32>
    %17 = tpu.matmul %14, %16, %cst_12 {dimension_numbers = #tpu.dot_dimension_numbers<[1], [1], [0], [0], [0, 0, 1, 0], [], []>} : vector<16x64xf32>, vector<32x64xf32>, vector<16x32xf32> -> vector<16x32xf32>
    %18 = arith.addf %15, %17 : vector<16x32xf32>
    %c0_13 = arith.constant 0 : index
    %c0_14 = arith.constant 0 : index
    %19 = vector.load %arg7[%c0_13, %c0_14] : memref<16x32xf32, #tpu.memory_space<vmem>>, vector<16x32xf32>
    tpu.vector_store %arg7[%c0_13, %c0_14], %18 {strides = array<i32>} : memref<16x32xf32, #tpu.memory_space<vmem>>, vector<16x32xf32>,
    %c0_i32_15 = arith.constant 0 : i32
    %20 = arith.cmpi eq, %arg1, %c0_i32_15 : i32
    %21 = arith.extui %20 : i1 to i32
    %c0_i32_16 = arith.constant 0 : i32
    %22 = arith.cmpi ne, %21, %c0_i32_16 : i32
    scf.if %22 {
      %c0_17 = arith.constant 0 : index
      %c0_18 = arith.constant 0 : index
      %23 = vector.load %arg7[%c0_17, %c0_18] : memref<16x32xf32, #tpu.memory_space<vmem>>, vector<16x32xf32>
      %c0_19 = arith.constant 0 : index
      %c0_20 = arith.constant 0 : index
      %24 = vector.load %arg6[%c0_19, %c0_20] : memref<16x32xf32, #tpu.memory_space<vmem>>, vector<16x32xf32>
      tpu.vector_store %arg6[%c0_19, %c0_20], %23 {strides = array<i32>} : memref<16x32xf32, #tpu.memory_space<vmem>>, vector<16x32xf32>,
    } else {
    }
    return
  }
  func.func @transform_0(%arg0: i32, %arg1: i32) -> (i32, i32) {
    %c0_i32 = arith.constant 0 : i32
    %c0_i32_0 = arith.constant 0 : i32
    return %arg0, %c0_i32 : i32, i32
  }
  func.func @transform_1(%arg0: i32, %arg1: i32) -> (i32, i32) {
    %c0_i32 = arith.constant 0 : i32
    %c0_i32_0 = arith.constant 0 : i32
    return %arg1, %c0_i32 : i32, i32
  }
  func.func @transform_2(%arg0: i32, %arg1: i32) -> (i32, i32) {
    %c0_i32 = arith.constant 0 : i32
    %c0_i32_0 = arith.constant 0 : i32
    return %arg1, %c0_i32 : i32, i32
  }
  func.func @transform_3(%arg0: i32, %arg1: i32) -> (i32, i32) {
    %c0_i32 = arith.constant 0 : i32
    %c0_i32_0 = arith.constant 0 : i32
    return %c0_i32, %arg1 : i32, i32
  }
  func.func @transform_4(%arg0: i32, %arg1: i32) -> (i32, i32) {
    %c0_i32 = arith.constant 0 : i32
    %c0_i32_0 = arith.constant 0 : i32
    return %arg0, %c0_i32 : i32, i32
  }
}

</mosaic_0001>

<llo_original>
// kernel: tpu_custom_call.1
$region0: #{tpu_custom_call.1}
  #allocation0 [shape = 'u32[]', space=smem, size = 0x4, offset = 0x4, fixed_abs, tag = 'smem constant byte address 0x4 - core index']
  #allocation1 [shape = 'u32[144,128]{1,0:T(1,128)}', space=vmem, size = 0x12000, scoped, tag = 'internal scratch']
  #allocation2 [shape = 'f32[16,32]{1,0:T(8,128)}', space=vmem, size = 0x2000, scoped, tag = 'scratch operand']
  %s0 = inlined_call_operand.vmem [shape: f32[16,32], index: 0, kind: input, shape index: {}]
  %s1 = inlined_call_operand.vmem [shape: f32[64,32], index: 1, kind: input, shape index: {}]
  %s2 = inlined_call_operand.vmem [shape: f32[64,32], index: 2, kind: input, shape index: {}]
  %s3 = inlined_call_operand.vmem [shape: f32[32,64], index: 3, kind: input, shape index: {}]
  %s4 = inlined_call_operand.hbm [shape: f32[16,32], index: 4, kind: output, shape index: {}]
  %s5 = sld [smem:[#allocation0]]
  $region34: #{tpu_custom_call.1} parent=0
    _
  %s7 = ssub.s32 1, %s5
  %s8 = scalar_select 0, %s7, %s5
  $region1: #{tpu_custom_call.1} parent=0
    #allocation3 [shape = 'u8[8192]{0}', space=vmem, size = 0x2000, scoped, tag = 'output window, operand 0, single buffered']
    #allocation4 [shape = 's32[1]{0}', space=sflag, size = 0x4, scoped, tag = 'scoped memory for tpu_custom_call.1']
    %9 = vsyncpa [#allocation4], 0
    // Predicated region
    $region2: #{tpu_custom_call.1} parent=1 // pred_check
      _
    $region3: #{tpu_custom_call.1} parent=1 // pred_check_branch
      %11 = sbr.rel (0) target = $region5
    $region4: #{tpu_custom_call.1} parent=1 // pred_region
      _
    $region5: #{tpu_custom_call.1} parent=1 // pred_fallthru
      _
    // Predicated region
    $region6: #{tpu_custom_call.1} parent=1 // pred_check
      _
    $region7: #{tpu_custom_call.1} parent=1 // pred_check_branch
      %13 = sbr.rel (0) target = $region9
    $region8: #{tpu_custom_call.1} parent=1 // pred_region
      _
    $region9: #{tpu_custom_call.1} parent=1 // pred_fallthru
      _
    // Predicated region
    $region10: #{tpu_custom_call.1} parent=1 // pred_check
      _
    $region11: #{tpu_custom_call.1} parent=1 // pred_check_branch
      %15 = sbr.rel (0) target = $region13
    $region12: #{tpu_custom_call.1} parent=1 // pred_region
      _
    $region13: #{tpu_custom_call.1} parent=1 // pred_fallthru
      _
    // Predicated region
    $region14: #{tpu_custom_call.1} parent=1 // pred_check
      _
    $region15: #{tpu_custom_call.1} parent=1 // pred_check_branch
      %17 = sbr.rel (0) target = $region17
    $region16: #{tpu_custom_call.1} parent=1 // pred_region
      _
    $region17: #{tpu_custom_call.1} parent=1 // pred_fallthru
      _
    %p18 = scmp.eq.s32.totalorder 0, 0
    // Predicated region
    $region18: #{tpu_custom_call.1} parent=1 // pred_check
      %p19 = pneg %p18
    $region19: #{tpu_custom_call.1} parent=1 // pred_check_branch
      %21 = sbr.rel (%p19) target = $region21
    $region20: #{tpu_custom_call.1} parent=1 // pred_region
      %vm22 = vcmask 261120
      %23 = vst.msk [vmem:[#allocation2] sm:$0xff] %vm22, 0.0
      %24 = vst.msk [vmem:[#allocation2 + $0x8] sm:$0xff] %vm22, 0.0
    $region21: #{tpu_custom_call.1} parent=1 // pred_fallthru
      _
    %v25 = vld [vmem:[%s0] sm:$0xff]
    %v26 = vld [vmem:[%s0 + $0x8] sm:$0xff]
    %v27 = vld [vmem:[%s1] sm:$0xff]
    %v28 = vld [vmem:[%s1 + $0x8] sm:$0xff]
    %v29 = vld [vmem:[%s1 + $0x10] sm:$0xff]
    %v30 = vld [vmem:[%s1 + $0x18] sm:$0xff]
    %v31 = vld [vmem:[%s1 + $0x20] sm:$0xff]
    %v32 = vld [vmem:[%s1 + $0x28] sm:$0xff]
    %v33 = vld [vmem:[%s1 + $0x30] sm:$0xff]
    %v34 = vld [vmem:[%s1 + $0x38] sm:$0xff]
    %vm35 = vcmask 261120
    %v37 = vsel %vm35, %v25, 0
    %v40 = vsel %vm35, %v26, 0
    %v43 = vsel %vm35, %v27, 0
    %v46 = vsel %vm35, %v28, 0
    %v49 = vsel %vm35, %v29, 0
    %v52 = vsel %vm35, %v30, 0
    %v55 = vsel %vm35, %v31, 0
    %v58 = vsel %vm35, %v32, 0
    %v61 = vsel %vm35, %v33, 0
    %v64 = vsel %vm35, %v34, 0
    %66 = vmatprep.subr.mxu0 0.0
    %67 = vmatpush1.xpose.msra.mxu0 %v43
    %68 = vmatprep.subr.mxu0 0.0
    %69 = vmatpush1.xpose.msra.mxu0 %v46
    %70 = vmatprep.subr.mxu0 0.0
    %71 = vmatpush1.xpose.msra.mxu0 %v49
    %72 = vmatprep.subr.mxu0 0.0
    %73 = vmatpush1.xpose.msra.mxu0 %v52
    %74 = vmatprep.subr.mxu0 0.0
    %75 = vmatpush1.xpose.msra.mxu0 %v55
    %76 = vmatprep.subr.mxu0 0.0
    %77 = vmatpush1.xpose.msra.mxu0 %v58
    %78 = vmatprep.subr.mxu0 0.0
    %79 = vmatpush1.xpose.msra.mxu0 %v61
    %80 = vmatprep.subr.mxu0 0.0
    %81 = vmatpush1.xpose.msra.mxu0 %v64
    %82 = vmatprep.subr.mxu0 0.0
    %83 = vmatpush1.xpose.msra.mxu0 0.0
    %84 = vmatprep.subr.mxu0 0.0
    %85 = vmatpush1.xpose.msra.mxu0 0.0
    %86 = vmatprep.subr.mxu0 0.0
    %87 = vmatpush1.xpose.msra.mxu0 0.0
    %88 = vmatprep.subr.mxu0 0.0
    %89 = vmatpush1.xpose.msra.mxu0 0.0
    %90 = vmatprep.subr.mxu0 0.0
    %91 = vmatpush1.xpose.msra.mxu0 0.0
    %92 = vmatprep.subr.mxu0 0.0
    %93 = vmatpush1.xpose.msra.mxu0 0.0
    %94 = vmatprep.subr.mxu0 0.0
    %95 = vmatpush1.xpose.msra.mxu0 0.0
    %96 = vmatprep.subr.mxu0 0.0
    %97 = vmatpush1.xpose.msra.mxu0 0.0
    %98 = vmatprep.subr.mxu0 0.0
    %99 = vmatpush1.xpose.msra.mxu0 0.0
    %100 = vmatprep.subr.mxu0 0.0
    %101 = vmatpush1.xpose.msra.mxu0 0.0
    %102 = vmatprep.subr.mxu0 0.0
    %103 = vmatpush1.xpose.msra.mxu0 0.0
    %104 = vmatprep.subr.mxu0 0.0
    %105 = vmatpush1.xpose.msra.mxu0 0.0
    %106 = vmatprep.subr.mxu0 0.0
    %107 = vmatpush1.xpose.msra.mxu0 0.0
    %108 = vmatprep.subr.mxu0 0.0
    %109 = vmatpush1.xpose.msra.mxu0 0.0
    %110 = vmatprep.subr.mxu0 0.0
    %111 = vmatpush1.xpose.msra.mxu0 0.0
    %112 = vmatprep.subr.mxu0 0.0
    %113 = vmatpush1.xpose.msra.mxu0 0.0
    %114 = vmatprep.subr.mxu0 0.0
    %115 = vmatpush1.xpose.msra.mxu0 0.0
    %116 = vmatprep.subr.mxu0 0.0
    %117 = vmatpush1.xpose.msra.mxu0 0.0
    %118 = vmatprep.subr.mxu0 0.0
    %119 = vmatpush1.xpose.msra.mxu0 0.0
    %120 = vmatprep.subr.mxu0 0.0
    %121 = vmatpush1.xpose.msra.mxu0 0.0
    %122 = vmatprep.subr.mxu0 0.0
    %123 = vmatpush1.xpose.msra.mxu0 0.0
    %124 = vmatprep.subr.mxu0 0.0
    %125 = vmatpush1.xpose.msra.mxu0 0.0
    %126 = vmatprep.subr.mxu0 0.0
    %127 = vmatpush1.xpose.msra.mxu0 0.0
    %128 = vmatprep.subr.mxu0 0.0
    %129 = vmatpush1.xpose.msra.mxu0 0.0
    %130 = vmatprep.mubr.f32.mxu0 0.0
    %131 = vmatmul.mubr.f32.gmra.mrb[0].mxu0 %v37
    %v132 = vpop.f32.mrb[0].mxu0
    %v133 = vadd.f32 0.0, %v132
    %v134 = vpop.f32.mrb[0].mxu0
    %135 = vmatprep.mubr.f32.mxu0 0.0
    %136 = vmatmul.mubr.f32.gmra.mrb[0].mxu0 %v40
    %v137 = vpop.f32.mrb[0].mxu0
    %v138 = vadd.f32 0.0, %v137
    %v139 = vpop.f32.mrb[0].mxu0
    %140 = vdwg.mxu0
    %v141 = vld [vmem:[%s2] sm:$0xff]
    %v142 = vld [vmem:[%s2 + $0x8] sm:$0xff]
    %v143 = vld [vmem:[%s2 + $0x10] sm:$0xff]
    %v144 = vld [vmem:[%s2 + $0x18] sm:$0xff]
    %v145 = vld [vmem:[%s2 + $0x20] sm:$0xff]
    %v146 = vld [vmem:[%s2 + $0x28] sm:$0xff]
    %v147 = vld [vmem:[%s2 + $0x30] sm:$0xff]
    %v148 = vld [vmem:[%s2 + $0x38] sm:$0xff]
    %v150 = vsel %vm35, %v141, 0
    %v153 = vsel %vm35, %v142, 0
    %v156 = vsel %vm35, %v143, 0
    %v159 = vsel %vm35, %v144, 0
    %v162 = vsel %vm35, %v145, 0
    %v165 = vsel %vm35, %v146, 0
    %v168 = vsel %vm35, %v147, 0
    %v171 = vsel %vm35, %v148, 0
    %173 = vmatprep.subr.mxu0 0.0
    %174 = vmatpush1.xpose.msra.mxu0 %v150
    %175 = vmatprep.subr.mxu0 0.0
    %176 = vmatpush1.xpose.msra.mxu0 %v153
    %177 = vmatprep.subr.mxu0 0.0
    %178 = vmatpush1.xpose.msra.mxu0 %v156
    %179 = vmatprep.subr.mxu0 0.0
    %180 = vmatpush1.xpose.msra.mxu0 %v159
    %181 = vmatprep.subr.mxu0 0.0
    %182 = vmatpush1.xpose.msra.mxu0 %v162
    %183 = vmatprep.subr.mxu0 0.0
    %184 = vmatpush1.xpose.msra.mxu0 %v165
    %185 = vmatprep.subr.mxu0 0.0
    %186 = vmatpush1.xpose.msra.mxu0 %v168
    %187 = vmatprep.subr.mxu0 0.0
    %188 = vmatpush1.xpose.msra.mxu0 %v171
    %189 = vmatprep.subr.mxu0 0.0
    %190 = vmatpush1.xpose.msra.mxu0 0.0
    %191 = vmatprep.subr.mxu0 0.0
    %192 = vmatpush1.xpose.msra.mxu0 0.0
    %193 = vmatprep.subr.mxu0 0.0
    %194 = vmatpush1.xpose.msra.mxu0 0.0
    %195 = vmatprep.subr.mxu0 0.0
    %196 = vmatpush1.xpose.msra.mxu0 0.0
    %197 = vmatprep.subr.mxu0 0.0
    %198 = vmatpush1.xpose.msra.mxu0 0.0
    %199 = vmatprep.subr.mxu0 0.0
    %200 = vmatpush1.xpose.msra.mxu0 0.0
    %201 = vmatprep.subr.mxu0 0.0
    %202 = vmatpush1.xpose.msra.mxu0 0.0
    %203 = vmatprep.subr.mxu0 0.0
    %204 = vmatpush1.xpose.msra.mxu0 0.0
    %205 = vmatprep.subr.mxu0 0.0
    %206 = vmatpush1.xpose.msra.mxu0 0.0
    %207 = vmatprep.subr.mxu0 0.0
    %208 = vmatpush1.xpose.msra.mxu0 0.0
    %209 = vmatprep.subr.mxu0 0.0
    %210 = vmatpush1.xpose.msra.mxu0 0.0
    %211 = vmatprep.subr.mxu0 0.0
    %212 = vmatpush1.xpose.msra.mxu0 0.0
    %213 = vmatprep.subr.mxu0 0.0
    %214 = vmatpush1.xpose.msra.mxu0 0.0
    %215 = vmatprep.subr.mxu0 0.0
    %216 = vmatpush1.xpose.msra.mxu0 0.0
    %217 = vmatprep.subr.mxu0 0.0
    %218 = vmatpush1.xpose.msra.mxu0 0.0
    %219 = vmatprep.subr.mxu0 0.0
    %220 = vmatpush1.xpose.msra.mxu0 0.0
    %221 = vmatprep.subr.mxu0 0.0
    %222 = vmatpush1.xpose.msra.mxu0 0.0
    %223 = vmatprep.subr.mxu0 0.0
    %224 = vmatpush1.xpose.msra.mxu0 0.0
    %225 = vmatprep.subr.mxu0 0.0
    %226 = vmatpush1.xpose.msra.mxu0 0.0
    %227 = vmatprep.subr.mxu0 0.0
    %228 = vmatpush1.xpose.msra.mxu0 0.0
    %229 = vmatprep.subr.mxu0 0.0
    %230 = vmatpush1.xpose.msra.mxu0 0.0
    %231 = vmatprep.subr.mxu0 0.0
    %232 = vmatpush1.xpose.msra.mxu0 0.0
    %233 = vmatprep.subr.mxu0 0.0
    %234 = vmatpush1.xpose.msra.mxu0 0.0
    %235 = vmatprep.subr.mxu0 0.0
    %236 = vmatpush1.xpose.msra.mxu0 0.0
    %237 = vmatprep.mubr.f32.mxu0 0.0
    %238 = vmatmul.mubr.f32.gmra.mrb[0].mxu0 %v37
    %v239 = vpop.f32.mrb[0].mxu0
    %v240 = vadd.f32 0.0, %v239
    %v241 = vpop.f32.mrb[0].mxu0
    %242 = vmatprep.mubr.f32.mxu0 0.0
    %243 = vmatmul.mubr.f32.gmra.mrb[0].mxu0 %v40
    %v244 = vpop.f32.mrb[0].mxu0
    %v245 = vadd.f32 0.0, %v244
    %v246 = vpop.f32.mrb[0].mxu0
    %247 = vdwg.mxu0
    %v248 = vxor.u32 %v133, 2147483648
    %v249 = vxor.u32 %v138, 2147483648
    %v250 = vmul.f32 %v248, 1.442695
    %v251 = vpow.pop %v250
    %v252 = vmul.f32 %v249, 1.442695
    %v253 = vpow.pop %v252
    %v254 = vadd.f32 %v251, 1.0
    %v255 = vadd.f32 %v253, 1.0
    %v256 = vrcp.pop %v254
    %v257 = vmul.f32 1.0, %v256
    %v258 = vrcp.pop %v255
    %v259 = vmul.f32 1.0, %v258
    %v260 = vmul.f32 %v133, %v257
    %v261 = vmul.f32 %v138, %v259
    %v262 = vmul.f32 %v260, %v240
    %v263 = vmul.f32 %v261, %v245
    %v264 = vld [vmem:[#allocation2] sm:$0xff]
    %v265 = vld [vmem:[#allocation2 + $0x8] sm:$0xff]
    %v266 = vld [vmem:[%s3] sm:$0xff]
    %v267 = vld [vmem:[%s3 + $0x8] sm:$0xff]
    %v268 = vld [vmem:[%s3 + $0x10] sm:$0xff]
    %v269 = vld [vmem:[%s3 + $0x18] sm:$0xff]
    %vm270 = vcmask 523264
    %v272 = vsel %vm270, %v262, 0
    %v275 = vsel %vm270, %v263, 0
    %v278 = vsel %vm270, %v266, 0
    %v281 = vsel %vm270, %v267, 0
    %v284 = vsel %vm270, %v268, 0
    %v287 = vsel %vm270, %v269, 0
    %289 = vmatprep.subr.mxu0 0.0
    %290 = vmatpush1.xpose.msra.mxu0 %v278
    %291 = vmatprep.subr.mxu0 0.0
    %292 = vmatpush1.xpose.msra.mxu0 %v281
    %293 = vmatprep.subr.mxu0 0.0
    %294 = vmatpush1.xpose.msra.mxu0 %v284
    %295 = vmatprep.subr.mxu0 0.0
    %296 = vmatpush1.xpose.msra.mxu0 %v287
    %297 = vmatprep.subr.mxu0 0.0
    %298 = vmatpush1.xpose.msra.mxu0 0.0
    %299 = vmatprep.subr.mxu0 0.0
    %300 = vmatpush1.xpose.msra.mxu0 0.0
    %301 = vmatprep.subr.mxu0 0.0
    %302 = vmatpush1.xpose.msra.mxu0 0.0
    %303 = vmatprep.subr.mxu0 0.0
    %304 = vmatpush1.xpose.msra.mxu0 0.0
    %305 = vmatprep.subr.mxu0 0.0
    %306 = vmatpush1.xpose.msra.mxu0 0.0
    %307 = vmatprep.subr.mxu0 0.0
    %308 = vmatpush1.xpose.msra.mxu0 0.0
    %309 = vmatprep.subr.mxu0 0.0
    %310 = vmatpush1.xpose.msra.mxu0 0.0
    %311 = vmatprep.subr.mxu0 0.0
    %312 = vmatpush1.xpose.msra.mxu0 0.0
    %313 = vmatprep.subr.mxu0 0.0
    %314 = vmatpush1.xpose.msra.mxu0 0.0
    %315 = vmatprep.subr.mxu0 0.0
    %316 = vmatpush1.xpose.msra.mxu0 0.0
    %317 = vmatprep.subr.mxu0 0.0
    %318 = vmatpush1.xpose.msra.mxu0 0.0
    %319 = vmatprep.subr.mxu0 0.0
    %320 = vmatpush1.xpose.msra.mxu0 0.0
    %321 = vmatprep.subr.mxu0 0.0
    %322 = vmatpush1.xpose.msra.mxu0 0.0
    %323 = vmatprep.subr.mxu0 0.0
    %324 = vmatpush1.xpose.msra.mxu0 0.0
    %325 = vmatprep.subr.mxu0 0.0
    %326 = vmatpush1.xpose.msra.mxu0 0.0
    %327 = vmatprep.subr.mxu0 0.0
    %328 = vmatpush1.xpose.msra.mxu0 0.0
    %329 = vmatprep.subr.mxu0 0.0
    %330 = vmatpush1.xpose.msra.mxu0 0.0
    %331 = vmatprep.subr.mxu0 0.0
    %332 = vmatpush1.xpose.msra.mxu0 0.0
    %333 = vmatprep.subr.mxu0 0.0
    %334 = vmatpush1.xpose.msra.mxu0 0.0
    %335 = vmatprep.subr.mxu0 0.0
    %336 = vmatpush1.xpose.msra.mxu0 0.0
    %337 = vmatprep.subr.mxu0 0.0
    %338 = vmatpush1.xpose.msra.mxu0 0.0
    %339 = vmatprep.subr.mxu0 0.0
    %340 = vmatpush1.xpose.msra.mxu0 0.0
    %341 = vmatprep.subr.mxu0 0.0
    %342 = vmatpush1.xpose.msra.mxu0 0.0
    %343 = vmatprep.subr.mxu0 0.0
    %344 = vmatpush1.xpose.msra.mxu0 0.0
    %345 = vmatprep.subr.mxu0 0.0
    %346 = vmatpush1.xpose.msra.mxu0 0.0
    %347 = vmatprep.subr.mxu0 0.0
    %348 = vmatpush1.xpose.msra.mxu0 0.0
    %349 = vmatprep.subr.mxu0 0.0
    %350 = vmatpush1.xpose.msra.mxu0 0.0
    %351 = vmatprep.subr.mxu0 0.0
    %352 = vmatpush1.xpose.msra.mxu0 0.0
    %353 = vmatprep.mubr.f32.mxu0 0.0
    %354 = vmatmul.mubr.f32.gmra.mrb[0].mxu0 %v272
    %v355 = vpop.f32.mrb[0].mxu0
    %v356 = vadd.f32 0.0, %v355
    %v357 = vpop.f32.mrb[0].mxu0
    %358 = vmatprep.mubr.f32.mxu0 0.0
    %359 = vmatmul.mubr.f32.gmra.mrb[0].mxu0 %v275
    %v360 = vpop.f32.mrb[0].mxu0
    %v361 = vadd.f32 0.0, %v360
    %v362 = vpop.f32.mrb[0].mxu0
    %363 = vdwg.mxu0
    %v364 = vadd.f32 %v264, %v356
    %v365 = vadd.f32 %v265, %v361
    %366 = vst.msk [vmem:[#allocation2] sm:$0xff] %vm35, %v364
    %367 = vst.msk [vmem:[#allocation2 + $0x8] sm:$0xff] %vm35, %v365
    // Predicated region
    $region22: #{tpu_custom_call.1} parent=1 // pred_check
      %p368 = pneg %p18
    $region23: #{tpu_custom_call.1} parent=1 // pred_check_branch
      %370 = sbr.rel (%p368) target = $region25
    $region24: #{tpu_custom_call.1} parent=1 // pred_region
      %v371 = vld [vmem:[#allocation2] sm:$0xff]
      %v372 = vld [vmem:[#allocation2 + $0x8] sm:$0xff]
      %373 = vst.msk [vmem:[#allocation3] sm:$0xff] %vm35, %v371
      %374 = vst.msk [vmem:[#allocation3 + $0x8] sm:$0xff] %vm35, %v372
    $region25: #{tpu_custom_call.1} parent=1 // pred_fallthru
      _
    // Predicated region
    $region26: #{tpu_custom_call.1} parent=1 // pred_check
      _
    $region27: #{tpu_custom_call.1} parent=1 // pred_check_branch
      %376 = sbr.rel (0) target = $region29
    $region28: #{tpu_custom_call.1} parent=1 // pred_region
      %s378 = ssub.s32 256, 256
      %379 = vsyncadd [#allocation4], %s378
      %s380 = sshll.u32 [#allocation3], 4
      %s381 = int_to_ptr.vmem [resolvable:$true] %s380
      %386 = dma.vmem_to_hbm [thread:$0]  %s381, 256, %s4, [#allocation4], 128, 128, 8
    $region29: #{tpu_custom_call.1} parent=1 // pred_fallthru
      _
    // Predicated region
    $region30: #{tpu_custom_call.1} parent=1 // pred_check
      _
    $region31: #{tpu_custom_call.1} parent=1 // pred_check_branch
      %388 = sbr.rel (0) target = $region33
    $region32: #{tpu_custom_call.1} parent=1 // pred_region
      %389 = dma.done [#allocation4], 256
    $region33: #{tpu_custom_call.1} parent=1 // pred_fallthru
      _
    %390 = vsyncpa [#allocation4], 1

</llo_original>
